<compile_context>
chip_gen: v5e
topology: v5e:2x2
jax: 0.10.0
libtpu: 0.0.40
codegen_flags: <defaults>
</compile_context>

<pallas_src>
import functools

import jax
import jax.numpy as jnp
from jax.experimental import pallas as pl
from jax.experimental.pallas import tpu as pltpu

LN_EPS = 1e-5        # F.layer_norm default eps
L2_EPS_SQ = 1e-24    # (F.normalize eps=1e-12)**2 ; 1/max(||x||,e) == rsqrt(max(ss, e^2))


# ---------------------------------------------------------------------------
# Pass 1: LayerNorm + fused per-head QKV projection + Q/K RMSNorm.
# ---------------------------------------------------------------------------
def _qkv_proj_kernel(x_ref, ln_g_ref, qg_ref, kg_ref, wqkv_ref,
                     qn_ref, kn_ref, v_ref, *, heads, dim_head):
    # x_ref: (1, Tn, D) f32.  wqkv_ref: (H, D, 3*Kd) bf16, VMEM resident.
    # Outputs: (1, H, Tn, Kd) bf16 each (head-major).
    x = x_ref[0]                                             # (Tn, D) f32

    # ---- LayerNorm (beta buffer == 0), f32 ----
    mean = jnp.mean(x, axis=-1, keepdims=True)
    xc = x - mean
    var = jnp.mean(xc * xc, axis=-1, keepdims=True)
    xn = xc * jax.lax.rsqrt(var + LN_EPS) * ln_g_ref[...]    # (Tn, D)
    xb = xn.astype(jnp.bfloat16)                             # bf16 MXU operand

    kd = dim_head
    # One fused (Tn, D) @ (D, 3*Kd) matmul per head; RMSNorm applied
    # immediately so only bf16 results are ever stored (no f32 scratch pass).
    # TODO(synk): convert to pl.loop / lax.fori_loop if `heads` grows large.
    for h in range(heads):
        proj = jnp.dot(xb, wqkv_ref[h],
                       preferred_element_type=jnp.float32)   # (Tn, 3*Kd) f32
        q = proj[:, 0 * kd:1 * kd]
        k = proj[:, 1 * kd:2 * kd]
        v = proj[:, 2 * kd:3 * kd]
        # F.normalize(x,-1)*sqrt(Kd)*gamma ; gamma pre-scaled by sqrt(Kd) in
        # the wrapper, clamp+divide replaced by rsqrt(max(ss, eps^2)) (EUP).
        q_inv = jax.lax.rsqrt(
            jnp.maximum(jnp.sum(q * q, axis=-1, keepdims=True), L2_EPS_SQ))
        k_inv = jax.lax.rsqrt(
            jnp.maximum(jnp.sum(k * k, axis=-1, keepdims=True), L2_EPS_SQ))
        qn_ref[0, h] = (q * q_inv * qg_ref[h]).astype(jnp.bfloat16)
        kn_ref[0, h] = (k * k_inv * kg_ref[h]).astype(jnp.bfloat16)
        v_ref[0, h] = v.astype(jnp.bfloat16)


# ---------------------------------------------------------------------------
# Pass 2: flash attention (online softmax over KV tiles) + output projection.
# ---------------------------------------------------------------------------
def _flash_attn_kernel(q_ref, k_ref, v_ref, wo_ref, o_ref,
                       m_scr, l_scr, acc_scr, *, heads):
    # q_ref: (1, H, Tq, Kd) bf16 (resident across the KV axis)
    # k_ref, v_ref: (1, H, Tkv, Kd) bf16 ; wo_ref: (H, Kd, D) bf16 resident.
    kv_i = pl.program_id(2)

    @pl.when(kv_i == 0)
    def _():
        m_scr[...] = jnp.full(m_scr.shape, -jnp.inf, dtype=m_scr.dtype)
        l_scr[...] = jnp.zeros(l_scr.shape, dtype=l_scr.dtype)
        acc_scr[...] = jnp.zeros(acc_scr.shape, dtype=acc_scr.dtype)

    q = q_ref[0]                                             # (H, Tq, Kd)
    k = k_ref[0]                                             # (H, Tkv, Kd)
    v = v_ref[0]                                             # (H, Tkv, Kd)

    s = jnp.einsum('hqd,hkd->hqk', q, k,
                   preferred_element_type=jnp.float32)       # (H, Tq, Tkv) f32
    m_prev = m_scr[...]                                      # (H, Tq, 1)
    m_new = jnp.maximum(m_prev, jnp.max(s, axis=-1, keepdims=True))
    alpha = jnp.exp(m_prev - m_new)
    p = jnp.exp(s - m_new)                                   # f32 exp (EUP)
    l_scr[...] = alpha * l_scr[...] + jnp.sum(p, axis=-1, keepdims=True)
    acc_scr[...] = alpha * acc_scr[...] + jnp.einsum(
        'hqk,hkd->hqd', p.astype(jnp.bfloat16), v,
        preferred_element_type=jnp.float32)                  # (H, Tq, Kd)
    m_scr[...] = m_new

    @pl.when(kv_i == pl.num_programs(2) - 1)
    def _():
        # Normalize once per query tile, then project: accumulate per head
        # into a single (Tq, D) value (no (H, N, D) intermediate, no VPU
        # head-sum).  Negligible-cost exact reciprocal (O(H*Tq) elements).
        out = None
        for h in range(heads):
            inv = pl.reciprocal(l_scr[h], approx=False)      # (Tq, 1)
            oh = (acc_scr[h] * inv).astype(jnp.bfloat16)     # (Tq, Kd)
            contrib = jnp.dot(oh, wo_ref[h],
                              preferred_element_type=jnp.float32)  # (Tq, D)
            out = contrib if out is None else out + contrib
        o_ref[0] = out


# ---------------------------------------------------------------------------
# Wrapper
# ---------------------------------------------------------------------------
def _pick_block(n, target):
    """Largest lane-friendly (multiple-of-128) block dividing n, else n."""
    if n <= target:
        return n
    for blk in range(target, 0, -1):
        if blk % 128 == 0 and n % blk == 0:
            return blk
    # TODO(synk): pad N to a multiple of 128 (with KV masking) instead.
    return n


def _vmem_limit_bytes():
    try:
        cap = pltpu.get_tpu_info().vmem_capacity_bytes
    except Exception:
        cap = 64 * 1024 * 1024   # conservative fallback, safe on all parts
    return int(cap * 0.85)


def attention_pallas(x, params, *, heads, dim_head,
                     proj_block=256, q_block=256, kv_block=None):
    """x: (B, N, D) float32. params: dict of plain JAX arrays."""
    b, n, dim = x.shape
    inner = heads * dim_head
    scale = dim_head ** 0.5

    vmem_limit = _vmem_limit_bytes()
    if kv_block is None:
        # Smaller KV tiles on 64 MiB/TC parts (v7x), larger on 128 MiB parts.
        kv_block = 256 if vmem_limit < 100 * 1024 * 1024 else 512

    tn = _pick_block(n, proj_block)
    tq = _pick_block(n, q_block)
    tkv = _pick_block(n, kv_block)

    # ---- one-time wrapper-side weight re-layout (head-major, bf16) ----
    wq = params["wq"].reshape(dim, heads, dim_head).transpose(1, 0, 2)
    wk = params["wkv"][:, :inner].reshape(dim, heads, dim_head).transpose(1, 0, 2)
    wv = params["wkv"][:, inner:].reshape(dim, heads, dim_head).transpose(1, 0, 2)
    w_qkv = jnp.concatenate([wq, wk, wv], axis=-1).astype(jnp.bfloat16)  # (H, D, 3Kd)
    wo = params["wo"].reshape(heads, dim_head, dim).astype(jnp.bfloat16)  # (H, Kd, D)

    ln_g = params["ln_gamma"].reshape(1, dim).astype(jnp.float32)
    # Fold the RMSNorm scale sqrt(dim_head) into the gammas (single constant).
    qg = (params["q_gamma"] * scale).reshape(heads, 1, dim_head).astype(jnp.float32)
    kg = (params["k_gamma"] * scale).reshape(heads, 1, dim_head).astype(jnp.float32)

    # Grid-invariant operands: whole array resident in VMEM (single copy).
    vmem_resident = pl.BlockSpec(memory_space=pltpu.MemorySpace.VMEM)

    # ---------------- pass 1: LN + fused QKV projection + RMSNorm ----------
    proj_cost = pl.CostEstimate(
        flops=int(2 * b * n * dim * 3 * inner),
        transcendentals=int(b * n * (1 + 2 * heads)),
        bytes_accessed=int(b * n * dim * 4 + 3 * b * n * inner * 2
                           + 3 * dim * inner * 2 + (dim + 2 * inner) * 4))

    qkv_shape = jax.ShapeDtypeStruct((b, heads, n, dim_head), jnp.bfloat16)
    qn, kn, v = pl.pallas_call(
        functools.partial(_qkv_proj_kernel, heads=heads, dim_head=dim_head),
        out_shape=(qkv_shape, qkv_shape, qkv_shape),
        grid=(b, n // tn),
        in_specs=[
            pl.BlockSpec((1, tn, dim), lambda bi, ni: (bi, ni, 0)),  # x block
            vmem_resident,                                           # ln gamma
            vmem_resident,                                           # q gamma*scale
            vmem_resident,                                           # k gamma*scale
            vmem_resident,                                           # W_qkv (H,D,3Kd) bf16
        ],
        out_specs=(
            pl.BlockSpec((1, heads, tn, dim_head), lambda bi, ni: (bi, 0, ni, 0)),
        ) * 3,
        compiler_params=pltpu.CompilerParams(
            dimension_semantics=("parallel", "parallel"),
            vmem_limit_bytes=vmem_limit),
        cost_estimate=proj_cost,
    )(x, ln_g, qg, kg, w_qkv)

    # ---------------- pass 2: flash attention + output projection ----------
    num_kv = n // tkv
    attn_cost = pl.CostEstimate(
        flops=int(4 * b * heads * n * n * dim_head + 2 * b * n * inner * dim),
        transcendentals=int(b * heads * n * (n + num_kv)),
        bytes_accessed=int(3 * b * n * inner * 2 + b * n * dim * 4
                           + inner * dim * 2))

    out = pl.pallas_call(
        functools.partial(_flash_attn_kernel, heads=heads),
        out_shape=jax.ShapeDtypeStruct((b, n, dim), jnp.float32),
        grid=(b, n // tq, num_kv),
        in_specs=[
            pl.BlockSpec((1, heads, tq, dim_head),
                         lambda bi, qi, ki: (bi, 0, qi, 0)),   # qn (KV-invariant)
            pl.BlockSpec((1, heads, tkv, dim_head),
                         lambda bi, qi, ki: (bi, 0, ki, 0)),   # kn
            pl.BlockSpec((1, heads, tkv, dim_head),
                         lambda bi, qi, ki: (bi, 0, ki, 0)),   # v
            vmem_resident,                                     # W_out (H,Kd,D) bf16
        ],
        out_specs=pl.BlockSpec((1, tq, dim), lambda bi, qi, ki: (bi, qi, 0)),
        scratch_shapes=[
            pltpu.VMEM((heads, tq, 1), jnp.float32),           # running max
            pltpu.VMEM((heads, tq, 1), jnp.float32),           # running denom
            pltpu.VMEM((heads, tq, dim_head), jnp.float32),    # output accumulator
        ],
        compiler_params=pltpu.CompilerParams(
            dimension_semantics=("parallel", "parallel", "arbitrary"),
            vmem_limit_bytes=vmem_limit),
        cost_estimate=attn_cost,
    )(qn, kn, v, wo)
    return out


# ---------------------------------------------------------------------------
# Pure-JAX reference + param init (verification)
# ---------------------------------------------------------------------------
def attention_reference(x, params, *, heads, dim_head):
    """Pure-JAX (f32) replica of the PyTorch forward, for verification."""
    b, n, dim = x.shape
    inner = heads * dim_head
    mean = jnp.mean(x, axis=-1, keepdims=True)
    var = jnp.mean((x - mean) ** 2, axis=-1, keepdims=True)
    xn = (x - mean) / jnp.sqrt(var + LN_EPS) * params["ln_gamma"]

    q = xn @ params["wq"]
    kv = xn @ params["wkv"]
    k, v = kv[..., :inner], kv[..., inner:]

    def split_heads(t):  # (b, n, h*d) -> (b, h, n, d)
        return jnp.transpose(t.reshape(b, n, heads, dim_head), (0, 2, 1, 3))

    q, k, v = map(split_heads, (q, k, v))
    scale = dim_head ** 0.5

    def l2n(t):
        return t / jnp.maximum(
            jnp.sqrt(jnp.sum(t * t, axis=-1, keepdims=True)), 1e-12)

    q = l2n(q) * scale * params["q_gamma"][None, :, None, :]
    k = l2n(k) * scale * params["k_gamma"][None, :, None, :]

    dots = jnp.einsum("bhid,bhjd->bhij", q, k)
    attn = jax.nn.softmax(dots, axis=-1)
    out = jnp.einsum("bhij,bhjd->bhid", attn, v)
    out = jnp.transpose(out, (0, 2, 1, 3)).reshape(b, n, inner)
    return out @ params["wo"]


def init_params(key, dim, heads, dim_head):
    inner = heads * dim_head
    k1, k2, k3 = jax.random.split(key, 3)
    return {
        "ln_gamma": jnp.ones((dim,), jnp.float32),
        "q_gamma": jnp.ones((heads, dim_head), jnp.float32),
        "k_gamma": jnp.ones((heads, dim_head), jnp.float32),
        "wq": (jax.random.normal(k1, (dim, inner), jnp.float32)
               / jnp.sqrt(dim)),
        "wkv": (jax.random.normal(k2, (dim, 2 * inner), jnp.float32)
                / jnp.sqrt(dim)),
        "wo": (jax.random.normal(k3, (inner, dim), jnp.float32)
               / jnp.sqrt(inner)),
    }


if __name__ == "__main__":
    B, N, DIM = 2, 8, 32
    HEADS, DIM_HEAD = 2, 16

    key = jax.random.PRNGKey(0)
    kx, kp = jax.random.split(key)
    x = jax.random.normal(kx, (B, N, DIM), jnp.float32)
    params = init_params(kp, DIM, HEADS, DIM_HEAD)

    out = attention_pallas(x, params, heads=HEADS, dim_head=DIM_HEAD)
    out = jax.block_until_ready(out)

    ref = attention_reference(x, params, heads=HEADS, dim_head=DIM_HEAD)
    assert out.shape == (B, N, DIM)

    # bf16 MXU operands / bf16 qkv intermediates give O(1e-2) absolute
    # deviations vs. the pure-f32 reference at these unit-scale toy shapes
    # (sharp softmax over dim_head=16), so the check is scale-aware.
    abs_err = float(jnp.max(jnp.abs(out - ref)))
    rel_err = float(jnp.linalg.norm(out - ref) / jnp.linalg.norm(ref))
    assert abs_err < 1e-1 and rel_err < 4e-2, (abs_err, rel_err)

    print("KERNEL_OK")
</pallas_src>

<mosaic_0001>
module attributes {stable_mosaic.version = 11 : i64} {
  func.func @_qkv_proj_kernel(%arg0: i32, %arg1: i32, %arg2: memref<1x8x32xf32, #tpu.memory_space<vmem>>, %arg3: memref<1x32xf32, #tpu.memory_space<vmem>>, %arg4: memref<2x1x16xf32, #tpu.memory_space<vmem>>, %arg5: memref<2x1x16xf32, #tpu.memory_space<vmem>>, %arg6: memref<2x32x48xbf16, #tpu.memory_space<vmem>>, %arg7: memref<1x2x8x16xbf16, #tpu.memory_space<vmem>>, %arg8: memref<1x2x8x16xbf16, #tpu.memory_space<vmem>>, %arg9: memref<1x2x8x16xbf16, #tpu.memory_space<vmem>>) attributes {dimension_semantics = [#tpu.dimension_semantics<parallel>, #tpu.dimension_semantics<parallel>], iteration_bounds = array<i64: 2, 1>, scalar_prefetch = 0 : i64, scratch_operands = 0 : i64, tpu.core_type = #tpu.core_type<tc>, window_params = [{transform_indices = @transform_0, window_bounds = array<i64: 1, 8, 32>}, {pipeline_mode = #tpu.pipeline_mode<synchronous>, transform_indices = @transform_1, window_bounds = array<i64: 1, 32>}, {pipeline_mode = #tpu.pipeline_mode<synchronous>, transform_indices = @transform_2, window_bounds = array<i64: 2, 1, 16>}, {pipeline_mode = #tpu.pipeline_mode<synchronous>, transform_indices = @transform_3, window_bounds = array<i64: 2, 1, 16>}, {pipeline_mode = #tpu.pipeline_mode<synchronous>, transform_indices = @transform_4, window_bounds = array<i64: 2, 32, 48>}, {transform_indices = @transform_5, window_bounds = array<i64: 1, 2, 8, 16>}, {transform_indices = @transform_6, window_bounds = array<i64: 1, 2, 8, 16>}, {transform_indices = @transform_7, window_bounds = array<i64: 1, 2, 8, 16>}]} {
    %c0 = arith.constant 0 : index
    %c0_0 = arith.constant 0 : index
    %c0_1 = arith.constant 0 : index
    %0 = vector.load %arg2[%c0, %c0_0, %c0_1] : memref<1x8x32xf32, #tpu.memory_space<vmem>>, vector<1x8x32xf32>
    %1 = vector.shape_cast %0 : vector<1x8x32xf32> to vector<8x32xf32>
    %cst = arith.constant dense<0.000000e+00> : vector<8xf32>
    %2 = vector.multi_reduction <add>, %1, %cst [1] : vector<8x32xf32> to vector<8xf32>
    %3 = vector.shape_cast %2 : vector<8xf32> to vector<8x1xf32>
    %cst_2 = arith.constant 3.200000e+01 : f32
    %4 = vector.broadcast %cst_2 : f32 to vector<8x1xf32>
    %5 = arith.divf %3, %4 : vector<8x1xf32>
    %6 = vector.broadcast %5 : vector<8x1xf32> to vector<8x32xf32>
    %7 = arith.subf %1, %6 : vector<8x32xf32>
    %8 = arith.mulf %7, %7 : vector<8x32xf32>
    %cst_3 = arith.constant dense<0.000000e+00> : vector<8xf32>
    %9 = vector.multi_reduction <add>, %8, %cst_3 [1] : vector<8x32xf32> to vector<8xf32>
    %10 = vector.shape_cast %9 : vector<8xf32> to vector<8x1xf32>
    %cst_4 = arith.constant 3.200000e+01 : f32
    %11 = vector.broadcast %cst_4 : f32 to vector<8x1xf32>
    %12 = arith.divf %10, %11 : vector<8x1xf32>
    %cst_5 = arith.constant 9.99999974E-6 : f32
    %13 = vector.broadcast %cst_5 : f32 to vector<8x1xf32>
    %14 = arith.addf %12, %13 : vector<8x1xf32>
    %15 = math.rsqrt %14 : vector<8x1xf32>
    %16 = vector.broadcast %15 : vector<8x1xf32> to vector<8x32xf32>
    %17 = arith.mulf %7, %16 : vector<8x32xf32>
    %c0_6 = arith.constant 0 : index
    %c0_7 = arith.constant 0 : index
    %18 = vector.load %arg3[%c0_6, %c0_7] : memref<1x32xf32, #tpu.memory_space<vmem>>, vector<1x32xf32>
    %19 = vector.broadcast %18 : vector<1x32xf32> to vector<8x32xf32>
    %20 = arith.mulf %17, %19 : vector<8x32xf32>
    %21 = arith.truncf %20 : vector<8x32xf32> to vector<8x32xbf16>
    %c0_8 = arith.constant 0 : index
    %c0_9 = arith.constant 0 : index
    %c0_10 = arith.constant 0 : index
    %22 = vector.load %arg6[%c0_8, %c0_9, %c0_10] : memref<2x32x48xbf16, #tpu.memory_space<vmem>>, vector<1x32x48xbf16>
    %23 = vector.shape_cast %22 : vector<1x32x48xbf16> to vector<32x48xbf16>
    %cst_11 = arith.constant dense<0.000000e+00> : vector<8x48xf32>
    %24 = tpu.matmul %21, %23, %cst_11 {dimension_numbers = #tpu.dot_dimension_numbers<[1], [0], [0], [1], [0, 0, 1, 1], [], []>} : vector<8x32xbf16>, vector<32x48xbf16>, vector<8x48xf32> -> vector<8x48xf32>
    %25 = vector.extract_strided_slice %24 {offsets = [0, 0], sizes = [8, 16], strides = [1, 1]} : vector<8x48xf32> to vector<8x16xf32>
    %26 = vector.extract_strided_slice %24 {offsets = [0, 16], sizes = [8, 16], strides = [1, 1]} : vector<8x48xf32> to vector<8x16xf32>
    %27 = vector.extract_strided_slice %24 {offsets = [0, 32], sizes = [8, 16], strides = [1, 1]} : vector<8x48xf32> to vector<8x16xf32>
    %28 = arith.mulf %25, %25 : vector<8x16xf32>
    %cst_12 = arith.constant dense<0.000000e+00> : vector<8xf32>
    %29 = vector.multi_reduction <add>, %28, %cst_12 [1] : vector<8x16xf32> to vector<8xf32>
    %30 = vector.shape_cast %29 : vector<8xf32> to vector<8x1xf32>
    %cst_13 = arith.constant 1.000000e-24 : f32
    %31 = vector.broadcast %cst_13 : f32 to vector<8x1xf32>
    %32 = arith.maximumf %30, %31 : vector<8x1xf32>
    %33 = math.rsqrt %32 : vector<8x1xf32>
    %34 = arith.mulf %26, %26 : vector<8x16xf32>
    %cst_14 = arith.constant dense<0.000000e+00> : vector<8xf32>
    %35 = vector.multi_reduction <add>, %34, %cst_14 [1] : vector<8x16xf32> to vector<8xf32>
    %36 = vector.shape_cast %35 : vector<8xf32> to vector<8x1xf32>
    %cst_15 = arith.constant 1.000000e-24 : f32
    %37 = vector.broadcast %cst_15 : f32 to vector<8x1xf32>
    %38 = arith.maximumf %36, %37 : vector<8x1xf32>
    %39 = math.rsqrt %38 : vector<8x1xf32>
    %40 = vector.broadcast %33 : vector<8x1xf32> to vector<8x16xf32>
    %41 = arith.mulf %25, %40 : vector<8x16xf32>
    %c0_16 = arith.constant 0 : index
    %c0_17 = arith.constant 0 : index
    %c0_18 = arith.constant 0 : index
    %42 = vector.load %arg4[%c0_16, %c0_17, %c0_18] : memref<2x1x16xf32, #tpu.memory_space<vmem>>, vector<1x1x16xf32>
    %43 = vector.shape_cast %42 : vector<1x1x16xf32> to vector<1x16xf32>
    %44 = vector.broadcast %43 : vector<1x16xf32> to vector<8x16xf32>
    %45 = arith.mulf %41, %44 : vector<8x16xf32>
    %46 = arith.truncf %45 : vector<8x16xf32> to vector<8x16xbf16>
    %c0_19 = arith.constant 0 : index
    %c0_20 = arith.constant 0 : index
    %c0_21 = arith.constant 0 : index
    %c0_22 = arith.constant 0 : index
    %47 = vector.load %arg7[%c0_19, %c0_20, %c0_21, %c0_22] : memref<1x2x8x16xbf16, #tpu.memory_space<vmem>>, vector<1x1x8x16xbf16>
    %48 = vector.shape_cast %47 : vector<1x1x8x16xbf16> to vector<8x16xbf16>
    %49 = vector.shape_cast %46 : vector<8x16xbf16> to vector<1x1x8x16xbf16>
    tpu.vector_store %arg7[%c0_19, %c0_20, %c0_21, %c0_22], %49 {strides = array<i32>} : memref<1x2x8x16xbf16, #tpu.memory_space<vmem>>, vector<1x1x8x16xbf16>,
    %50 = vector.broadcast %39 : vector<8x1xf32> to vector<8x16xf32>
    %51 = arith.mulf %26, %50 : vector<8x16xf32>
    %c0_23 = arith.constant 0 : index
    %c0_24 = arith.constant 0 : index
    %c0_25 = arith.constant 0 : index
    %52 = vector.load %arg5[%c0_23, %c0_24, %c0_25] : memref<2x1x16xf32, #tpu.memory_space<vmem>>, vector<1x1x16xf32>
    %53 = vector.shape_cast %52 : vector<1x1x16xf32> to vector<1x16xf32>
    %54 = vector.broadcast %53 : vector<1x16xf32> to vector<8x16xf32>
    %55 = arith.mulf %51, %54 : vector<8x16xf32>
    %56 = arith.truncf %55 : vector<8x16xf32> to vector<8x16xbf16>
    %c0_26 = arith.constant 0 : index
    %c0_27 = arith.constant 0 : index
    %c0_28 = arith.constant 0 : index
    %c0_29 = arith.constant 0 : index
    %57 = vector.load %arg8[%c0_26, %c0_27, %c0_28, %c0_29] : memref<1x2x8x16xbf16, #tpu.memory_space<vmem>>, vector<1x1x8x16xbf16>
    %58 = vector.shape_cast %57 : vector<1x1x8x16xbf16> to vector<8x16xbf16>
    %59 = vector.shape_cast %56 : vector<8x16xbf16> to vector<1x1x8x16xbf16>
    tpu.vector_store %arg8[%c0_26, %c0_27, %c0_28, %c0_29], %59 {strides = array<i32>} : memref<1x2x8x16xbf16, #tpu.memory_space<vmem>>, vector<1x1x8x16xbf16>,
    %60 = arith.truncf %27 : vector<8x16xf32> to vector<8x16xbf16>
    %c0_30 = arith.constant 0 : index
    %c0_31 = arith.constant 0 : index
    %c0_32 = arith.constant 0 : index
    %c0_33 = arith.constant 0 : index
    %61 = vector.load %arg9[%c0_30, %c0_31, %c0_32, %c0_33] : memref<1x2x8x16xbf16, #tpu.memory_space<vmem>>, vector<1x1x8x16xbf16>
    %62 = vector.shape_cast %61 : vector<1x1x8x16xbf16> to vector<8x16xbf16>
    %63 = vector.shape_cast %60 : vector<8x16xbf16> to vector<1x1x8x16xbf16>
    tpu.vector_store %arg9[%c0_30, %c0_31, %c0_32, %c0_33], %63 {strides = array<i32>} : memref<1x2x8x16xbf16, #tpu.memory_space<vmem>>, vector<1x1x8x16xbf16>,
    %c1 = arith.constant 1 : index
    %c0_34 = arith.constant 0 : index
    %c0_35 = arith.constant 0 : index
    %64 = vector.load %arg6[%c1, %c0_34, %c0_35] : memref<2x32x48xbf16, #tpu.memory_space<vmem>>, vector<1x32x48xbf16>
    %65 = vector.shape_cast %64 : vector<1x32x48xbf16> to vector<32x48xbf16>
    %cst_36 = arith.constant dense<0.000000e+00> : vector<8x48xf32>
    %66 = tpu.matmul %21, %65, %cst_36 {dimension_numbers = #tpu.dot_dimension_numbers<[1], [0], [0], [1], [0, 0, 1, 1], [], []>} : vector<8x32xbf16>, vector<32x48xbf16>, vector<8x48xf32> -> vector<8x48xf32>
    %67 = vector.extract_strided_slice %66 {offsets = [0, 0], sizes = [8, 16], strides = [1, 1]} : vector<8x48xf32> to vector<8x16xf32>
    %68 = vector.extract_strided_slice %66 {offsets = [0, 16], sizes = [8, 16], strides = [1, 1]} : vector<8x48xf32> to vector<8x16xf32>
    %69 = vector.extract_strided_slice %66 {offsets = [0, 32], sizes = [8, 16], strides = [1, 1]} : vector<8x48xf32> to vector<8x16xf32>
    %70 = arith.mulf %67, %67 : vector<8x16xf32>
    %cst_37 = arith.constant dense<0.000000e+00> : vector<8xf32>
    %71 = vector.multi_reduction <add>, %70, %cst_37 [1] : vector<8x16xf32> to vector<8xf32>
    %72 = vector.shape_cast %71 : vector<8xf32> to vector<8x1xf32>
    %cst_38 = arith.constant 1.000000e-24 : f32
    %73 = vector.broadcast %cst_38 : f32 to vector<8x1xf32>
    %74 = arith.maximumf %72, %73 : vector<8x1xf32>
    %75 = math.rsqrt %74 : vector<8x1xf32>
    %76 = arith.mulf %68, %68 : vector<8x16xf32>
    %cst_39 = arith.constant dense<0.000000e+00> : vector<8xf32>
    %77 = vector.multi_reduction <add>, %76, %cst_39 [1] : vector<8x16xf32> to vector<8xf32>
    %78 = vector.shape_cast %77 : vector<8xf32> to vector<8x1xf32>
    %cst_40 = arith.constant 1.000000e-24 : f32
    %79 = vector.broadcast %cst_40 : f32 to vector<8x1xf32>
    %80 = arith.maximumf %78, %79 : vector<8x1xf32>
    %81 = math.rsqrt %80 : vector<8x1xf32>
    %82 = vector.broadcast %75 : vector<8x1xf32> to vector<8x16xf32>
    %83 = arith.mulf %67, %82 : vector<8x16xf32>
    %c1_41 = arith.constant 1 : index
    %c0_42 = arith.constant 0 : index
    %c0_43 = arith.constant 0 : index
    %84 = vector.load %arg4[%c1_41, %c0_42, %c0_43] : memref<2x1x16xf32, #tpu.memory_space<vmem>>, vector<1x1x16xf32>
    %85 = vector.shape_cast %84 : vector<1x1x16xf32> to vector<1x16xf32>
    %86 = vector.broadcast %85 : vector<1x16xf32> to vector<8x16xf32>
    %87 = arith.mulf %83, %86 : vector<8x16xf32>
    %88 = arith.truncf %87 : vector<8x16xf32> to vector<8x16xbf16>
    %c0_44 = arith.constant 0 : index
    %c1_45 = arith.constant 1 : index
    %c0_46 = arith.constant 0 : index
    %c0_47 = arith.constant 0 : index
    %89 = vector.load %arg7[%c0_44, %c1_45, %c0_46, %c0_47] : memref<1x2x8x16xbf16, #tpu.memory_space<vmem>>, vector<1x1x8x16xbf16>
    %90 = vector.shape_cast %89 : vector<1x1x8x16xbf16> to vector<8x16xbf16>
    %91 = vector.shape_cast %88 : vector<8x16xbf16> to vector<1x1x8x16xbf16>
    tpu.vector_store %arg7[%c0_44, %c1_45, %c0_46, %c0_47], %91 {strides = array<i32>} : memref<1x2x8x16xbf16, #tpu.memory_space<vmem>>, vector<1x1x8x16xbf16>,
    %92 = vector.broadcast %81 : vector<8x1xf32> to vector<8x16xf32>
    %93 = arith.mulf %68, %92 : vector<8x16xf32>
    %c1_48 = arith.constant 1 : index
    %c0_49 = arith.constant 0 : index
    %c0_50 = arith.constant 0 : index
    %94 = vector.load %arg5[%c1_48, %c0_49, %c0_50] : memref<2x1x16xf32, #tpu.memory_space<vmem>>, vector<1x1x16xf32>
    %95 = vector.shape_cast %94 : vector<1x1x16xf32> to vector<1x16xf32>
    %96 = vector.broadcast %95 : vector<1x16xf32> to vector<8x16xf32>
    %97 = arith.mulf %93, %96 : vector<8x16xf32>
    %98 = arith.truncf %97 : vector<8x16xf32> to vector<8x16xbf16>
    %c0_51 = arith.constant 0 : index
    %c1_52 = arith.constant 1 : index
    %c0_53 = arith.constant 0 : index
    %c0_54 = arith.constant 0 : index
    %99 = vector.load %arg8[%c0_51, %c1_52, %c0_53, %c0_54] : memref<1x2x8x16xbf16, #tpu.memory_space<vmem>>, vector<1x1x8x16xbf16>
    %100 = vector.shape_cast %99 : vector<1x1x8x16xbf16> to vector<8x16xbf16>
    %101 = vector.shape_cast %98 : vector<8x16xbf16> to vector<1x1x8x16xbf16>
    tpu.vector_store %arg8[%c0_51, %c1_52, %c0_53, %c0_54], %101 {strides = array<i32>} : memref<1x2x8x16xbf16, #tpu.memory_space<vmem>>, vector<1x1x8x16xbf16>,
    %102 = arith.truncf %69 : vector<8x16xf32> to vector<8x16xbf16>
    %c0_55 = arith.constant 0 : index
    %c1_56 = arith.constant 1 : index
    %c0_57 = arith.constant 0 : index
    %c0_58 = arith.constant 0 : index
    %103 = vector.load %arg9[%c0_55, %c1_56, %c0_57, %c0_58] : memref<1x2x8x16xbf16, #tpu.memory_space<vmem>>, vector<1x1x8x16xbf16>
    %104 = vector.shape_cast %103 : vector<1x1x8x16xbf16> to vector<8x16xbf16>
    %105 = vector.shape_cast %102 : vector<8x16xbf16> to vector<1x1x8x16xbf16>
    tpu.vector_store %arg9[%c0_55, %c1_56, %c0_57, %c0_58], %105 {strides = array<i32>} : memref<1x2x8x16xbf16, #tpu.memory_space<vmem>>, vector<1x1x8x16xbf16>,
    return
  }
  func.func @transform_0(%arg0: i32, %arg1: i32) -> (i32, i32, i32) {
    %c0_i32 = arith.constant 0 : i32
    %c0_i32_0 = arith.constant 0 : i32
    return %arg0, %arg1, %c0_i32 : i32, i32, i32
  }
  func.func @transform_1(%arg0: i32, %arg1: i32) -> (i32, i32) {
    %c0_i32 = arith.constant 0 : i32
    %c0_i32_0 = arith.constant 0 : i32
    %c0_i32_1 = arith.constant 0 : i32
    return %c0_i32, %c0_i32_0 : i32, i32
  }
  func.func @transform_2(%arg0: i32, %arg1: i32) -> (i32, i32, i32) {
    %c0_i32 = arith.constant 0 : i32
    %c0_i32_0 = arith.constant 0 : i32
    %c0_i32_1 = arith.constant 0 : i32
    %c0_i32_2 = arith.constant 0 : i32
    return %c0_i32, %c0_i32_0, %c0_i32_1 : i32, i32, i32
  }
  func.func @transform_3(%arg0: i32, %arg1: i32) -> (i32, i32, i32) {
    %c0_i32 = arith.constant 0 : i32
    %c0_i32_0 = arith.constant 0 : i32
    %c0_i32_1 = arith.constant 0 : i32
    %c0_i32_2 = arith.constant 0 : i32
    return %c0_i32, %c0_i32_0, %c0_i32_1 : i32, i32, i32
  }
  func.func @transform_4(%arg0: i32, %arg1: i32) -> (i32, i32, i32) {
    %c0_i32 = arith.constant 0 : i32
    %c0_i32_0 = arith.constant 0 : i32
    %c0_i32_1 = arith.constant 0 : i32
    %c0_i32_2 = arith.constant 0 : i32
    return %c0_i32, %c0_i32_0, %c0_i32_1 : i32, i32, i32
  }
  func.func @transform_5(%arg0: i32, %arg1: i32) -> (i32, i32, i32, i32) {
    %c0_i32 = arith.constant 0 : i32
    %c0_i32_0 = arith.constant 0 : i32
    %c0_i32_1 = arith.constant 0 : i32
    return %arg0, %c0_i32, %arg1, %c0_i32_0 : i32, i32, i32, i32
  }
  func.func @transform_6(%arg0: i32, %arg1: i32) -> (i32, i32, i32, i32) {
    %c0_i32 = arith.constant 0 : i32
    %c0_i32_0 = arith.constant 0 : i32
    %c0_i32_1 = arith.constant 0 : i32
    return %arg0, %c0_i32, %arg1, %c0_i32_0 : i32, i32, i32, i32
  }
  func.func @transform_7(%arg0: i32, %arg1: i32) -> (i32, i32, i32, i32) {
    %c0_i32 = arith.constant 0 : i32
    %c0_i32_0 = arith.constant 0 : i32
    %c0_i32_1 = arith.constant 0 : i32
    return %arg0, %c0_i32, %arg1, %c0_i32_0 : i32, i32, i32, i32
  }
}

</mosaic_0001>

<llo_original>
// kernel: tpu_custom_call.1
$region0: #{tpu_custom_call.1}
  #allocation0 [shape = 'u32[]', space=smem, size = 0x4, offset = 0x4, fixed_abs, tag = 'smem constant byte address 0x4 - core index']
  #allocation1 [shape = 'u32[72,128]{1,0:T(1,128)}', space=vmem, size = 0x9000, scoped, tag = 'internal scratch']
  %s0 = inlined_call_operand.hbm [shape: f32[2,8,32], index: 0, kind: input, shape index: {}]
  %s1 = inlined_call_operand.hbm [shape: f32[1,32], index: 1, kind: input, shape index: {}]
  %s2 = inlined_call_operand.hbm [shape: f32[2,1,16], index: 2, kind: input, shape index: {}]
  %s3 = inlined_call_operand.vmem [shape: f32[2,1,16], index: 3, kind: input, shape index: {}]
  %s4 = inlined_call_operand.hbm [shape: bf16[2,32,48], index: 4, kind: input, shape index: {}]
  %s5 = inlined_call_operand.hbm [shape: bf16[2,2,8,16], index: 5, kind: output, shape index: {0}]
  %s6 = inlined_call_operand.hbm [shape: bf16[2,2,8,16], index: 6, kind: output, shape index: {1}]
  %s7 = inlined_call_operand.hbm [shape: bf16[2,2,8,16], index: 7, kind: output, shape index: {2}]
  %8 = xla_tuple %s5, %s6, %s7
  %s9 = sld [smem:[#allocation0]]
  $region85: #{tpu_custom_call.1} parent=0
    _
  %s11 = ssub.s32 1, %s9
  %s12 = scalar_select 0, %s11, %s9
  $region1: #{tpu_custom_call.1} parent=0
    #allocation2 [shape = 'u8[8192]{0}', space=vmem, size = 0x2000, scoped, tag = 'input window, operand 0']
    #allocation3 [shape = 's32[2]{0}', space=sflag, size = 0x8, scoped, tag = 'scoped memory for tpu_custom_call.1']
    #allocation4 [shape = 's32[2]{0}', space=sflag, size = 0x8, scoped, tag = 'scoped memory for tpu_custom_call.1']
    #allocation5 [shape = 'u8[512]{0}', space=vmem, size = 0x400, scoped, tag = 'input window, operand 1, single buffered']
    #allocation6 [shape = 's32[1]{0}', space=sflag, size = 0x4, scoped, tag = 'scoped memory for tpu_custom_call.1']
    #allocation7 [shape = 'u8[1024]{0}', space=vmem, size = 0x400, scoped, tag = 'input window, operand 2, single buffered']
    #allocation8 [shape = 'u8[16384]{0}', space=vmem, size = 0x4000, scoped, tag = 'input window, operand 4, single buffered']
    #allocation9 [shape = 's32[1]{0}', space=sflag, size = 0x4, scoped, tag = 'scoped memory for tpu_custom_call.1']
    #allocation10 [shape = 'u8[8192]{0}', space=vmem, size = 0x2000, scoped, tag = 'output window, operand 0']
    #allocation11 [shape = 'u8[8192]{0}', space=vmem, size = 0x2000, scoped, tag = 'output window, operand 1']
    #allocation12 [shape = 's32[2]{0}', space=sflag, size = 0x8, scoped, tag = 'scoped memory for tpu_custom_call.1']
    #allocation13 [shape = 'u8[8192]{0}', space=vmem, size = 0x2000, scoped, tag = 'output window, operand 2']
    %13 = vsyncpa [#allocation3], 0
    %s14 = scalar_lea.sflag [#allocation3], 1
    %15 = vsyncpa %s14, 0
    %16 = vsyncpa [#allocation6], 0
    %17 = vsyncpa [#allocation9], 0
    %18 = vsyncpa [#allocation4], 0
    %s19 = scalar_lea.sflag [#allocation4], 1
    %20 = vsyncpa %s19, 0
    %21 = vsyncpa [#allocation12], 0
    %s22 = scalar_lea.sflag [#allocation12], 1
    %23 = vsyncpa %s22, 0
    loop: start=0, step=1, limit=4
    $region2: #{tpu_custom_call.1} parent=1 // loop_pre_header
      _
    $region3: #{tpu_custom_call.1} parent=1 // loop_header
      %s25 = sphi 0, %s29
      %p26 = scmp.ge.s32.totalorder %s25, 4
      %s32 = sphi 0, %s44
      %s33 = sphi 0, %s40
      %s34 = sphi 0, %s32
      %s35 = sphi 0, %s33
      %s36 = sphi 0, %s34
      %s37 = sphi 0, %s35
      %s49 = sphi 0, %s51
      %s52 = sphi 0, %s49
      %s53 = sphi 0, %s52
      %s69 = sphi 0, %s53
      %s73 = sphi 0, %s73
      %s75 = sphi 0, %s73
      %s76 = sphi 0, %s75
      %s90 = sphi 0, %s76
      %s94 = sphi 0, %s94
      %s96 = sphi 0, %s94
      %s97 = sphi 0, %s96
      %s111 = sphi 0, %s97
      %s115 = sphi 0, %s115
      %s117 = sphi 0, %s115
      %s118 = sphi 0, %s117
      %s132 = sphi 0, %s118
      %s136 = sphi 0, %s136
      %s138 = sphi 0, %s136
      %s139 = sphi 0, %s138
      %s153 = sphi 0, %s139
      %s161 = sphi 0, %s163
      %s164 = sphi 0, %s161
      %s165 = sphi 0, %s164
      %s181 = sphi 0, %s165
      %s189 = sphi 0, %s191
      %s192 = sphi 0, %s189
      %s193 = sphi 0, %s192
      %s209 = sphi 0, %s193
      %s217 = sphi 0, %s219
      %s220 = sphi 0, %s217
      %s221 = sphi 0, %s220
      %s237 = sphi 0, %s221
    $region4: #{tpu_custom_call.1} parent=1 // loop_header_branch
      %28 = sbr.rel (%p26) target = $region8
    $region5: #{tpu_custom_call.1} parent=1 // loop_body
      %s30 = ssub.s32 %s25, 1
      %s31 = ssub.s32 %s25, 2
      %s38 = sadd.s32 1, %s33
      %p39 = scmp.ge.s32.totalorder %s38, 1
      %s40 = scalar_select %p39, 0, %s38
      %s41 = sadd.s32 1, %s32
      %s42 = scalar_select %p39, %s41, %s32
      %p43 = scmp.ge.s32.totalorder %s42, 2
      %s44 = scalar_select %p43, 0, %s42
      %s45 = ssub.s32 %s32, %s44
      %s46 = ssub.s32 %s33, %s40
      %s47 = sor.u32 %s45, %s46
      %p48 = scmp.eq.s32.totalorder %s47, 0
      %s50 = sadd.s32 %s49, 1
      %s51 = scalar_select %p48, %s49, %s50
      %p54 = pneg %p48
      %p55 = scmp.eq.s32.totalorder %s25, 1
      %p56 = por %p54, %p55
      %p57 = scmp.ne.s32.totalorder %s49, %s52
      %p58 = scmp.eq.s32.totalorder %s25, 0
      %p59 = por %p57, %p58
      %p60 = scmp.ne.s32.totalorder %s49, %s52
      %p61 = scmp.eq.s32.totalorder %s30, 1
      %p62 = por %p60, %p61
      %p63 = scmp.ne.s32.totalorder %s52, %s53
      %p64 = scmp.eq.s32.totalorder %s30, 0
      %p65 = por %p63, %p64
      %p66 = scmp.ne.s32.totalorder %s52, %s53
      %p67 = scmp.eq.s32.totalorder %s31, 1
      %p68 = por %p66, %p67
      %p70 = scmp.ne.s32.totalorder %s53, %s69
      %p71 = scmp.eq.s32.totalorder %s31, 0
      %p72 = por %p70, %p71
      %s74 = sadd.s32 %s73, 1
      %p77 = scmp.eq.s32.totalorder %s25, 1
      %p78 = scmp.ne.s32.totalorder %s73, %s75
      %p79 = scmp.eq.s32.totalorder %s25, 0
      %p80 = por %p78, %p79
      %p81 = scmp.ne.s32.totalorder %s73, %s75
      %p82 = scmp.eq.s32.totalorder %s30, 1
      %p83 = por %p81, %p82
      %p84 = scmp.ne.s32.totalorder %s75, %s76
      %p85 = scmp.eq.s32.totalorder %s30, 0
      %p86 = por %p84, %p85
      %p87 = scmp.ne.s32.totalorder %s75, %s76
      %p88 = scmp.eq.s32.totalorder %s31, 1
      %p89 = por %p87, %p88
      %p91 = scmp.ne.s32.totalorder %s76, %s90
      %p92 = scmp.eq.s32.totalorder %s31, 0
      %p93 = por %p91, %p92
      %s95 = sadd.s32 %s94, 1
      %p98 = scmp.eq.s32.totalorder %s25, 1
      %p99 = scmp.ne.s32.totalorder %s94, %s96
      %p100 = scmp.eq.s32.totalorder %s25, 0
      %p101 = por %p99, %p100
      %p102 = scmp.ne.s32.totalorder %s94, %s96
      %p103 = scmp.eq.s32.totalorder %s30, 1
      %p104 = por %p102, %p103
      %p105 = scmp.ne.s32.totalorder %s96, %s97
      %p106 = scmp.eq.s32.totalorder %s30, 0
      %p107 = por %p105, %p106
      %p108 = scmp.ne.s32.totalorder %s96, %s97
      %p109 = scmp.eq.s32.totalorder %s31, 1
      %p110 = por %p108, %p109
      %p112 = scmp.ne.s32.totalorder %s97, %s111
      %p113 = scmp.eq.s32.totalorder %s31, 0
      %p114 = por %p112, %p113
      %s116 = sadd.s32 %s115, 1
      %p119 = scmp.eq.s32.totalorder %s25, 1
      %p120 = scmp.ne.s32.totalorder %s115, %s117
      %p121 = scmp.eq.s32.totalorder %s25, 0
      %p122 = por %p120, %p121
      %p123 = scmp.ne.s32.totalorder %s115, %s117
      %p124 = scmp.eq.s32.totalorder %s30, 1
      %p125 = por %p123, %p124
      %p126 = scmp.ne.s32.totalorder %s117, %s118
      %p127 = scmp.eq.s32.totalorder %s30, 0
      %p128 = por %p126, %p127
      %p129 = scmp.ne.s32.totalorder %s117, %s118
      %p130 = scmp.eq.s32.totalorder %s31, 1
      %p131 = por %p129, %p130
      %p133 = scmp.ne.s32.totalorder %s118, %s132
      %p134 = scmp.eq.s32.totalorder %s31, 0
      %p135 = por %p133, %p134
      %s137 = sadd.s32 %s136, 1
      %p140 = scmp.eq.s32.totalorder %s25, 1
      %p141 = scmp.ne.s32.totalorder %s136, %s138
      %p142 = scmp.eq.s32.totalorder %s25, 0
      %p143 = por %p141, %p142
      %p144 = scmp.ne.s32.totalorder %s136, %s138
      %p145 = scmp.eq.s32.totalorder %s30, 1
      %p146 = por %p144, %p145
      %p147 = scmp.ne.s32.totalorder %s138, %s139
      %p148 = scmp.eq.s32.totalorder %s30, 0
      %p149 = por %p147, %p148
      %p150 = scmp.ne.s32.totalorder %s138, %s139
      %p151 = scmp.eq.s32.totalorder %s31, 1
      %p152 = por %p150, %p151
      %p154 = scmp.ne.s32.totalorder %s139, %s153
      %p155 = scmp.eq.s32.totalorder %s31, 0
      %p156 = por %p154, %p155
      %s157 = ssub.s32 %s32, %s44
      %s158 = ssub.s32 %s33, %s40
      %s159 = sor.u32 %s157, %s158
      %p160 = scmp.eq.s32.totalorder %s159, 0
      %s162 = sadd.s32 %s161, 1
      %s163 = scalar_select %p160, %s161, %s162
      %p166 = pneg %p160
      %p167 = scmp.eq.s32.totalorder %s25, 1
      %p168 = por %p166, %p167
      %p169 = scmp.ne.s32.totalorder %s161, %s164
      %p170 = scmp.eq.s32.totalorder %s25, 0
      %p171 = por %p169, %p170
      %p172 = scmp.ne.s32.totalorder %s161, %s164
      %p173 = scmp.eq.s32.totalorder %s30, 1
      %p174 = por %p172, %p173
      %p175 = scmp.ne.s32.totalorder %s164, %s165
      %p176 = scmp.eq.s32.totalorder %s30, 0
      %p177 = por %p175, %p176
      %p178 = scmp.ne.s32.totalorder %s164, %s165
      %p179 = scmp.eq.s32.totalorder %s31, 1
      %p180 = por %p178, %p179
      %p182 = scmp.ne.s32.totalorder %s165, %s181
      %p183 = scmp.eq.s32.totalorder %s31, 0
      %p184 = por %p182, %p183
      %s185 = ssub.s32 %s32, %s44
      %s186 = ssub.s32 %s33, %s40
      %s187 = sor.u32 %s185, %s186
      %p188 = scmp.eq.s32.totalorder %s187, 0
      %s190 = sadd.s32 %s189, 1
      %s191 = scalar_select %p188, %s189, %s190
      %p194 = pneg %p188
      %p195 = scmp.eq.s32.totalorder %s25, 1
      %p196 = por %p194, %p195
      %p197 = scmp.ne.s32.totalorder %s189, %s192
      %p198 = scmp.eq.s32.totalorder %s25, 0
      %p199 = por %p197, %p198
      %p200 = scmp.ne.s32.totalorder %s189, %s192
      %p201 = scmp.eq.s32.totalorder %s30, 1
      %p202 = por %p200, %p201
      %p203 = scmp.ne.s32.totalorder %s192, %s193
      %p204 = scmp.eq.s32.totalorder %s30, 0
      %p205 = por %p203, %p204
      %p206 = scmp.ne.s32.totalorder %s192, %s193
      %p207 = scmp.eq.s32.totalorder %s31, 1
      %p208 = por %p206, %p207
      %p210 = scmp.ne.s32.totalorder %s193, %s209
      %p211 = scmp.eq.s32.totalorder %s31, 0
      %p212 = por %p210, %p211
      %s213 = ssub.s32 %s32, %s44
      %s214 = ssub.s32 %s33, %s40
      %s215 = sor.u32 %s213, %s214
      %p216 = scmp.eq.s32.totalorder %s215, 0
      %s218 = sadd.s32 %s217, 1
      %s219 = scalar_select %p216, %s217, %s218
      %p222 = pneg %p216
      %p223 = scmp.eq.s32.totalorder %s25, 1
      %p224 = por %p222, %p223
      %p225 = scmp.ne.s32.totalorder %s217, %s220
      %p226 = scmp.eq.s32.totalorder %s25, 0
      %p227 = por %p225, %p226
      %p228 = scmp.ne.s32.totalorder %s217, %s220
      %p229 = scmp.eq.s32.totalorder %s30, 1
      %p230 = por %p228, %p229
      %p231 = scmp.ne.s32.totalorder %s220, %s221
      %p232 = scmp.eq.s32.totalorder %s30, 0
      %p233 = por %p231, %p232
      %p234 = scmp.ne.s32.totalorder %s220, %s221
      %p235 = scmp.eq.s32.totalorder %s31, 1
      %p236 = por %p234, %p235
      %p238 = scmp.ne.s32.totalorder %s221, %s237
      %p239 = scmp.eq.s32.totalorder %s31, 0
      %p240 = por %p238, %p239
      %p241 = scmp.le.s32.totalorder 1, %s25
      %p242 = scmp.lt.s32.totalorder %s25, 3
      %p243 = pnand %p241, %p242
      %p244 = pneg %p243
      // Predicated region
      $region9: #{tpu_custom_call.1} parent=5 // pred_check
        _
      $region10: #{tpu_custom_call.1} parent=5 // pred_check_branch
        %246 = sbr.rel (%p243) target = $region12
      $region11: #{tpu_custom_call.1} parent=5 // pred_region
        %s247 = ssub.s32 %s25, 1
        // Predicated region
        $region13: #{tpu_custom_call.1} parent=11 // pred_check
          %p248 = pneg %p86
        $region14: #{tpu_custom_call.1} parent=11 // pred_check_branch
          %250 = sbr.rel (%p248) target = $region16
        $region15: #{tpu_custom_call.1} parent=11 // pred_region
          %252 = vsyncadd [#allocation6], 0
          %s254 = sshll.u32 %s1, 4
          %s255 = int_to_ptr.hbm [resolvable:$true] %s254
          %s256 = sshll.u32 [#allocation5], 4
          %s257 = int_to_ptr.vmem [resolvable:$true] %s256
          %259 = dma.hbm_to_vmem [thread:$0]  %s255, 16, %s257, [#allocation6]
        $region16: #{tpu_custom_call.1} parent=11 // pred_fallthru
          _
        // Predicated region
        $region17: #{tpu_custom_call.1} parent=11 // pred_check
          %p260 = pneg %p107
        $region18: #{tpu_custom_call.1} parent=11 // pred_check_branch
          %262 = sbr.rel (%p260) target = $region20
        $region19: #{tpu_custom_call.1} parent=11 // pred_region
          %264 = vsyncadd [#allocation6], 0
          %s265 = sshll.u32 %s2, 4
          %s266 = int_to_ptr.hbm [resolvable:$true] %s265
          %s267 = sshll.u32 [#allocation7], 4
          %s268 = int_to_ptr.vmem [resolvable:$true] %s267
          %273 = dma.hbm_to_vmem [thread:$0]  %s266, 32, %s268, [#allocation6], 16, 16, 1
        $region20: #{tpu_custom_call.1} parent=11 // pred_fallthru
          _
        // Predicated region
        $region21: #{tpu_custom_call.1} parent=11 // pred_check
          %p274 = pneg %p128
        $region22: #{tpu_custom_call.1} parent=11 // pred_check_branch
          %276 = sbr.rel (%p274) target = $region24
        $region23: #{tpu_custom_call.1} parent=11 // pred_region
          _
        $region24: #{tpu_custom_call.1} parent=11 // pred_fallthru
          _
        // Predicated region
        $region25: #{tpu_custom_call.1} parent=11 // pred_check
          %p277 = pneg %p149
        $region26: #{tpu_custom_call.1} parent=11 // pred_check_branch
          %279 = sbr.rel (%p277) target = $region28
        $region27: #{tpu_custom_call.1} parent=11 // pred_region
          %281 = vsyncadd [#allocation9], 0
          %s282 = sshll.u32 %s4, 4
          %s283 = int_to_ptr.hbm [resolvable:$true] %s282
          %s284 = sshll.u32 [#allocation8], 4
          %s285 = int_to_ptr.vmem [resolvable:$true] %s284
          %290 = dma.hbm_to_vmem [thread:$0]  %s283, 512, %s285, [#allocation9], 64, 64, 4
        $region28: #{tpu_custom_call.1} parent=11 // pred_fallthru
          _
      $region12: #{tpu_custom_call.1} parent=5 // pred_fallthru
        _
      %p291 = scmp.lt.s32.totalorder %s25, 2
      // Predicated region
      $region29: #{tpu_custom_call.1} parent=5 // pred_check
        %p292 = pneg %p291
      $region30: #{tpu_custom_call.1} parent=5 // pred_check_branch
        %294 = sbr.rel (%p292) target = $region32
      $region31: #{tpu_custom_call.1} parent=5 // pred_region
        // Predicated region
        $region33: #{tpu_custom_call.1} parent=31 // pred_check
          %p295 = pneg %p59
        $region34: #{tpu_custom_call.1} parent=31 // pred_check_branch
          %297 = sbr.rel (%p295) target = $region36
        $region35: #{tpu_custom_call.1} parent=31 // pred_region
          %s298 = sand.u32 %s49, 1
          %s299 = scalar_lea.sflag [#allocation3], %s298
          %s300 = sand.u32 %s49, 1
          %s301 = smul.addr %s300, 8
          %s302 = scalar_lea.vmem [#allocation2], %s301
          %304 = vsyncadd %s299, 0
          %s305 = sadd.s32 %s33, %s32
          %s306 = smul.addr %s305, 8
          %s307 = scalar_lea.hbm %s0, %s306
          %s309 = sshll.u32 %s307, 4
          %s310 = int_to_ptr.hbm [resolvable:$true] %s309
          %s311 = sshll.u32 %s302, 4
          %s312 = int_to_ptr.vmem [resolvable:$true] %s311
          %314 = dma.hbm_to_vmem [thread:$0]  %s310, 128, %s312, %s299
        $region36: #{tpu_custom_call.1} parent=31 // pred_fallthru
          _
      $region32: #{tpu_custom_call.1} parent=5 // pred_fallthru
        _
      %p315 = scmp.le.s32.totalorder 1, %s25
      %p316 = scmp.lt.s32.totalorder %s25, 3
      %p317 = pnand %p315, %p316
      %p318 = pneg %p317
      // Predicated region
      $region37: #{tpu_custom_call.1} parent=5 // pred_check
        _
      $region38: #{tpu_custom_call.1} parent=5 // pred_check_branch
        %320 = sbr.rel (%p317) target = $region40
      $region39: #{tpu_custom_call.1} parent=5 // pred_region
        %s321 = ssub.s32 %s25, 1
        %s322 = sand.u32 %s52, 1
        %s323 = scalar_lea.sflag [#allocation3], %s322
        %s324 = sand.u32 %s52, 1
        %s325 = smul.addr %s324, 8
        %s326 = scalar_lea.vmem [#allocation2], %s325
        // Predicated region
        $region41: #{tpu_custom_call.1} parent=39 // pred_check
          %p327 = pneg %p65
        $region42: #{tpu_custom_call.1} parent=39 // pred_check_branch
          %329 = sbr.rel (%p327) target = $region44
        $region43: #{tpu_custom_call.1} parent=39 // pred_region
          %331 = dma.done %s323, 128
        $region44: #{tpu_custom_call.1} parent=39 // pred_fallthru
          _
        // Predicated region
        $region45: #{tpu_custom_call.1} parent=39 // pred_check
          %p332 = pneg %p86
        $region46: #{tpu_custom_call.1} parent=39 // pred_check_branch
          %334 = sbr.rel (%p332) target = $region48
        $region47: #{tpu_custom_call.1} parent=39 // pred_region
          %336 = dma.done [#allocation6], 16
        $region48: #{tpu_custom_call.1} parent=39 // pred_fallthru
          _
        // Predicated region
        $region49: #{tpu_custom_call.1} parent=39 // pred_check
          %p337 = pneg %p107
        $region50: #{tpu_custom_call.1} parent=39 // pred_check_branch
          %339 = sbr.rel (%p337) target = $region52
        $region51: #{tpu_custom_call.1} parent=39 // pred_region
          %341 = dma.done [#allocation6], 32
        $region52: #{tpu_custom_call.1} parent=39 // pred_fallthru
          _
        // Predicated region
        $region53: #{tpu_custom_call.1} parent=39 // pred_check
          %p342 = pneg %p149
        $region54: #{tpu_custom_call.1} parent=39 // pred_check_branch
          %344 = sbr.rel (%p342) target = $region56
        $region55: #{tpu_custom_call.1} parent=39 // pred_region
          %346 = dma.done [#allocation9], 512
        $region56: #{tpu_custom_call.1} parent=39 // pred_fallthru
          _
        %s347 = sand.u32 %s52, 1
        %s348 = scalar_lea.sflag [#allocation3], %s347
        %s349 = sand.u32 %s52, 1
        %s350 = smul.addr %s349, 8
        %s351 = scalar_lea.vmem [#allocation2], %s350
        %p352 = pneg %p65
        %p353 = pneg %p62
        %p354 = pneg %p86
        %p355 = pneg %p83
        %p356 = pneg %p107
        %p357 = pneg %p104
        %p358 = pneg %p128
        %p359 = pneg %p125
        %p360 = pneg %p149
        %p361 = pneg %p146
        %p362 = pneg %p177
        %p363 = pneg %p174
        %s364 = sand.u32 %s164, 1
        %s365 = scalar_lea.sflag [#allocation4], %s364
        %s366 = sand.u32 %s164, 1
        %s367 = smul.addr %s366, 8
        %s368 = scalar_lea.vmem [#allocation10], %s367
        %p369 = pneg %p205
        %p370 = pneg %p202
        %s371 = sand.u32 %s30, 1
        %s372 = scalar_lea.sflag [#allocation12], %s371
        %s373 = sand.u32 %s192, 1
        %s374 = smul.addr %s373, 8
        %s375 = scalar_lea.vmem [#allocation11], %s374
        %p376 = pneg %p233
        %p377 = pneg %p230
        %s378 = sand.u32 %s30, 1
        %s379 = scalar_lea.sflag [#allocation12], %s378
        %s380 = sand.u32 %s220, 1
        %s381 = smul.addr %s380, 8
        %s382 = scalar_lea.vmem [#allocation13], %s381
        %v384 = vld [vmem:[%s326] sm:$0xff]
        %vm385 = vcmask 261120
        %v386 = vsel %vm385, %v384, 0.0
        %387 = vadd.xlane.f32.xlu0 %v386
        %v388 = vpop.xlane.xlu0 %387
        %v389 = vrcp.pop 32.0
        %v390 = vmul.f32 32.0, %v389
        %v391 = vsub.f32 1.0, %v390
        %v392 = vmul.f32 %v389, %v391
        %v393 = vadd.f32 %v389, %v392
        %vm394 = vweird.f32 %v389
        %v395 = vsel %vm394, %v389, %v393
        %v396 = vmul.f32 %v388, %v395
        %v397 = vsub.f32 %v384, %v396
        %v398 = vmul.f32 %v397, %v397
        %v399 = vsel %vm385, %v398, 0.0
        %400 = vadd.xlane.f32.xlu0 %v399
        %v401 = vpop.xlane.xlu0 %400
        %v402 = vmul.f32 %v401, %v395
        %v403 = vadd.f32 %v402, 1e-05
        %v404 = vrsqrt.pop %v403
        %v405 = vmul.f32 %v404, %v403
        %v406 = vmul.f32 %v405, %v404
        %v407 = vmul.f32 0.5, %v406
        %v408 = vsub.f32 1.5, %v407
        %v409 = vmul.f32 %v404, %v408
        %vm410 = vweird.f32 %v403
        %vm411 = vweird.f32 %v404
        %vm412 = vmor %vm410, %vm411
        %v413 = vsel %vm412, %v404, %v409
        %v414 = vmul.f32 %v397, %v413
        %v415 = vld [vmem:[#allocation5] sm:$0x1]
        %v417 = vperm.slane %v415, 0
        %v419 = vmul.f32 %v414, %v417
        %v420 = vpack.c.bf16 %v419, %v419
        %v421 = vld [vmem:[#allocation8] sm:$0xf]
        %v422 = vld [vmem:[#allocation8 + $0x4] sm:$0xf]
        %v423 = vld [vmem:[#allocation8 + $0x8] sm:$0xf]
        %v424 = vld [vmem:[#allocation8 + $0xc] sm:$0xf]
        %v429 = vunpack.c.l.b16 %v421
        %v430 = vunpack.c.l.b16 %v422
        %v431 = vunpack.c.l.b16 %v423
        %v432 = vunpack.c.l.b16 %v424
        %v433 = vpack.c.b16 %v430, %v429
        %v434 = vpack.c.b16 %v432, %v431
        %v438 = vsel %vm385, %v420, 0
        %440 = vmatpush.bf16.msra.mxu0 0
        %441 = vmatpush.bf16.msra.mxu0 0
        %442 = vmatpush.bf16.msra.mxu0 0
        %443 = vmatpush.bf16.msra.mxu0 0
        %444 = vmatpush.bf16.msra.mxu0 0
        %445 = vmatpush.bf16.msra.mxu0 0
        %446 = vmatpush.bf16.msra.mxu0 %v434
        %447 = vmatpush.bf16.msra.mxu0 %v433
        %448 = vmatmul.bf16.gmra.mxu0 %v438
        %v449 = vpop.f32.mrf.mxu0
        %v450 = vadd.f32 0.0, %v449
        %v451 = vpop.f32.mrf.mxu0
        %452 = vdwg.mxu0
        %v453 = vmul.f32 %v450, %v450
        %vm454 = vcmask 130048
        %v455 = vsel %vm454, %v453, 0.0
        %456 = vadd.xlane.f32.xlu0 %v455
        %v457 = vpop.xlane.xlu0 %456
        %v458 = vmax.f32 %v457, 1e-24
        %v459 = vrsqrt.pop %v458
        %v460 = vmul.f32 %v459, %v458
        %v461 = vmul.f32 %v460, %v459
        %v462 = vmul.f32 0.5, %v461
        %v463 = vsub.f32 1.5, %v462
        %v464 = vmul.f32 %v459, %v463
        %vm465 = vweird.f32 %v458
        %vm466 = vweird.f32 %v459
        %vm467 = vmor %vm465, %vm466
        %v468 = vsel %vm467, %v459, %v464
        %470 = vrot.lane.b32.xlu0 %v453, 112
        %v471 = vpop.permute.xlu0 %470
        %v473 = vsel %vm454, %v471, 0.0
        %474 = vadd.xlane.f32.xlu0 %v473
        %v475 = vpop.xlane.xlu0 %474
        %v476 = vmax.f32 %v475, 1e-24
        %v477 = vrsqrt.pop %v476
        %v478 = vmul.f32 %v477, %v476
        %v479 = vmul.f32 %v478, %v477
        %v480 = vmul.f32 0.5, %v479
        %v481 = vsub.f32 1.5, %v480
        %v482 = vmul.f32 %v477, %v481
        %vm483 = vweird.f32 %v476
        %vm484 = vweird.f32 %v477
        %vm485 = vmor %vm483, %vm484
        %v486 = vsel %vm485, %v477, %v482
        %v487 = vmul.f32 %v450, %v468
        %v488 = vld [vmem:[#allocation7] sm:$0x1]
        %v490 = vperm.slane %v488, 0
        %v492 = vmul.f32 %v487, %v490
        %v493 = vpack.c.bf16 %v492, %v492
        %vm494 = vcmask 125952
        %495 = vst.msk [vmem:[%s368] sm:$0xf] %vm494, %v493
        %v496 = vmul.f32 %v450, %v486
        %v497 = vld [vmem:[%s3] sm:$0x1]
        %v499 = vperm.slane %v497, 0
        %500 = vrot.lane.b32.xlu0 %v499, 16
        %v501 = vpop.permute.xlu0 %500
        %v503 = vmul.f32 %v496, %v501
        %v504 = vpack.c.bf16 %v503, %v503
        %506 = vrot.lane.b32.xlu0 %v504, 112
        %v507 = vpop.permute.xlu0 %506
        %509 = vst.msk [vmem:[%s375] sm:$0xf] %vm494, %v507
        %v510 = vpack.c.bf16 %v450, %v450
        %512 = vrot.lane.b32.xlu0 %v510, 96
        %v513 = vpop.permute.xlu0 %512
        %515 = vst.msk [vmem:[%s382] sm:$0xf] %vm494, %v513
        %s516 = scalar_lea.vmem [#allocation8], 16
        %v517 = vld [vmem:[%s516] sm:$0xf]
        %v518 = vld [vmem:[%s516 + $0x4] sm:$0xf]
        %v519 = vld [vmem:[%s516 + $0x8] sm:$0xf]
        %v520 = vld [vmem:[%s516 + $0xc] sm:$0xf]
        %v525 = vunpack.c.l.b16 %v517
        %v526 = vunpack.c.l.b16 %v518
        %v527 = vunpack.c.l.b16 %v519
        %v528 = vunpack.c.l.b16 %v520
        %v529 = vpack.c.b16 %v526, %v525
        %v530 = vpack.c.b16 %v528, %v527
        %533 = vmatpush.bf16.msra.mxu0 0
        %534 = vmatpush.bf16.msra.mxu0 0
        %535 = vmatpush.bf16.msra.mxu0 0
        %536 = vmatpush.bf16.msra.mxu0 0
        %537 = vmatpush.bf16.msra.mxu0 0
        %538 = vmatpush.bf16.msra.mxu0 0
        %539 = vmatpush.bf16.msra.mxu0 %v530
        %540 = vmatpush.bf16.msra.mxu0 %v529
        %541 = vmatmul.bf16.gmra.mxu0 %v438
        %v542 = vpop.f32.mrf.mxu0
        %v543 = vadd.f32 0.0, %v542
        %v544 = vpop.f32.mrf.mxu0
        %545 = vdwg.mxu0
        %v546 = vmul.f32 %v543, %v543
        %v547 = vsel %vm454, %v546, 0.0
        %548 = vadd.xlane.f32.xlu0 %v547
        %v549 = vpop.xlane.xlu0 %548
        %v550 = vmax.f32 %v549, 1e-24
        %v551 = vrsqrt.pop %v550
        %v552 = vmul.f32 %v551, %v550
        %v553 = vmul.f32 %v552, %v551
        %v554 = vmul.f32 0.5, %v553
        %v555 = vsub.f32 1.5, %v554
        %v556 = vmul.f32 %v551, %v555
        %vm557 = vweird.f32 %v550
        %vm558 = vweird.f32 %v551
        %vm559 = vmor %vm557, %vm558
        %v560 = vsel %vm559, %v551, %v556
        %562 = vrot.lane.b32.xlu0 %v546, 112
        %v563 = vpop.permute.xlu0 %562
        %v565 = vsel %vm454, %v563, 0.0
        %566 = vadd.xlane.f32.xlu0 %v565
        %v567 = vpop.xlane.xlu0 %566
        %v568 = vmax.f32 %v567, 1e-24
        %v569 = vrsqrt.pop %v568
        %v570 = vmul.f32 %v569, %v568
        %v571 = vmul.f32 %v570, %v569
        %v572 = vmul.f32 0.5, %v571
        %v573 = vsub.f32 1.5, %v572
        %v574 = vmul.f32 %v569, %v573
        %vm575 = vweird.f32 %v568
        %vm576 = vweird.f32 %v569
        %vm577 = vmor %vm575, %vm576
        %v578 = vsel %vm577, %v569, %v574
        %v579 = vmul.f32 %v543, %v560
        %s580 = scalar_lea.vmem [#allocation7], 1
        %v581 = vld [vmem:[%s580] sm:$0x1]
        %v583 = vperm.slane %v581, 0
        %v585 = vmul.f32 %v579, %v583
        %v586 = vpack.c.bf16 %v585, %v585
        %s587 = scalar_lea.vmem %s368, 4 [#allocation10]
        %588 = vst.msk [vmem:[%s587] sm:$0xf] %vm494, %v586
        %v589 = vmul.f32 %v543, %v578
        %s590 = scalar_lea.vmem %s3, 1
        %v591 = vld [vmem:[%s590] sm:$0x1]
        %v593 = vperm.slane %v591, 0
        %594 = vrot.lane.b32.xlu0 %v593, 16
        %v595 = vpop.permute.xlu0 %594
        %v597 = vmul.f32 %v589, %v595
        %v598 = vpack.c.bf16 %v597, %v597
        %600 = vrot.lane.b32.xlu0 %v598, 112
        %v601 = vpop.permute.xlu0 %600
        %s603 = scalar_lea.vmem %s375, 4 [#allocation11]
        %604 = vst.msk [vmem:[%s603] sm:$0xf] %vm494, %v601
        %v605 = vpack.c.bf16 %v543, %v543
        %607 = vrot.lane.b32.xlu0 %v605, 96
        %v608 = vpop.permute.xlu0 %607
        %s610 = scalar_lea.vmem %s382, 4 [#allocation13]
        %611 = vst.msk [vmem:[%s610] sm:$0xf] %vm494, %v608
        %s612 = sand.u32 %s164, 1
        %s613 = scalar_lea.sflag [#allocation4], %s612
        %s614 = sand.u32 %s164, 1
        %s615 = smul.addr %s614, 8
        %s616 = scalar_lea.vmem [#allocation10], %s615
        %s617 = sand.u32 %s30, 1
        %s618 = scalar_lea.sflag [#allocation12], %s617
        %s619 = sand.u32 %s192, 1
        %s620 = smul.addr %s619, 8
        %s621 = scalar_lea.vmem [#allocation11], %s620
        %s622 = sand.u32 %s30, 1
        %s623 = scalar_lea.sflag [#allocation12], %s622
        %s624 = sand.u32 %s220, 1
        %s625 = smul.addr %s624, 8
        %s626 = scalar_lea.vmem [#allocation13], %s625
        // Predicated region
        $region57: #{tpu_custom_call.1} parent=39 // pred_check
          %p627 = pneg %p174
        $region58: #{tpu_custom_call.1} parent=39 // pred_check_branch
          %629 = sbr.rel (%p627) target = $region60
        $region59: #{tpu_custom_call.1} parent=39 // pred_region
          %631 = vsyncadd %s613, 0
          %s632 = smul.addr %s34, 2
          %s633 = sadd.s32 %s35, %s632
          %s634 = smul.addr %s633, 4
          %s635 = scalar_lea.hbm %s5, %s634
          %s636 = sshll.u32 %s616, 4
          %s637 = int_to_ptr.vmem [resolvable:$true] %s636
          %s638 = sshll.u32 %s635, 4
          %s639 = int_to_ptr.hbm [resolvable:$true] %s638
          %644 = dma.vmem_to_hbm [thread:$0]  %s637, 128, %s639, %s613, 64, 64, 4
        $region60: #{tpu_custom_call.1} parent=39 // pred_fallthru
          _
        // Predicated region
        $region61: #{tpu_custom_call.1} parent=39 // pred_check
          %p645 = pneg %p202
        $region62: #{tpu_custom_call.1} parent=39 // pred_check_branch
          %647 = sbr.rel (%p645) target = $region64
        $region63: #{tpu_custom_call.1} parent=39 // pred_region
          %649 = vsyncadd %s618, 0
          %s650 = smul.addr %s34, 2
          %s651 = sadd.s32 %s35, %s650
          %s652 = smul.addr %s651, 4
          %s653 = scalar_lea.hbm %s6, %s652
          %s654 = sshll.u32 %s621, 4
          %s655 = int_to_ptr.vmem [resolvable:$true] %s654
          %s656 = sshll.u32 %s653, 4
          %s657 = int_to_ptr.hbm [resolvable:$true] %s656
          %662 = dma.vmem_to_hbm [thread:$0]  %s655, 128, %s657, %s618, 64, 64, 4
        $region64: #{tpu_custom_call.1} parent=39 // pred_fallthru
          _
        // Predicated region
        $region65: #{tpu_custom_call.1} parent=39 // pred_check
          %p663 = pneg %p230
        $region66: #{tpu_custom_call.1} parent=39 // pred_check_branch
          %665 = sbr.rel (%p663) target = $region68
        $region67: #{tpu_custom_call.1} parent=39 // pred_region
          %667 = vsyncadd %s623, 0
          %s668 = smul.addr %s34, 2
          %s669 = sadd.s32 %s35, %s668
          %s670 = smul.addr %s669, 4
          %s671 = scalar_lea.hbm %s7, %s670
          %s672 = sshll.u32 %s626, 4
          %s673 = int_to_ptr.vmem [resolvable:$true] %s672
          %s674 = sshll.u32 %s671, 4
          %s675 = int_to_ptr.hbm [resolvable:$true] %s674
          %680 = dma.vmem_to_hbm [thread:$0]  %s673, 128, %s675, %s623, 64, 64, 4
        $region68: #{tpu_custom_call.1} parent=39 // pred_fallthru
          _
      $region40: #{tpu_custom_call.1} parent=5 // pred_fallthru
        _
      %p681 = scmp.le.s32.totalorder 2, %s25
      // Predicated region
      $region69: #{tpu_custom_call.1} parent=5 // pred_check
        %p682 = pneg %p681
      $region70: #{tpu_custom_call.1} parent=5 // pred_check_branch
        %684 = sbr.rel (%p682) target = $region72
      $region71: #{tpu_custom_call.1} parent=5 // pred_region
        %s685 = ssub.s32 %s25, 2
        // Predicated region
        $region73: #{tpu_custom_call.1} parent=71 // pred_check
          %p686 = pneg %p180
        $region74: #{tpu_custom_call.1} parent=71 // pred_check_branch
          %688 = sbr.rel (%p686) target = $region76
        $region75: #{tpu_custom_call.1} parent=71 // pred_region
          %s689 = sand.u32 %s165, 1
          %s690 = scalar_lea.sflag [#allocation4], %s689
          %s691 = sand.u32 %s165, 1
          %s692 = smul.addr %s691, 8
          %s693 = scalar_lea.vmem [#allocation10], %s692
          %695 = dma.done %s690, 128
        $region76: #{tpu_custom_call.1} parent=71 // pred_fallthru
          _
        // Predicated region
        $region77: #{tpu_custom_call.1} parent=71 // pred_check
          %p696 = pneg %p208
        $region78: #{tpu_custom_call.1} parent=71 // pred_check_branch
          %698 = sbr.rel (%p696) target = $region80
        $region79: #{tpu_custom_call.1} parent=71 // pred_region
          %s699 = sand.u32 %s31, 1
          %s700 = scalar_lea.sflag [#allocation12], %s699
          %s701 = sand.u32 %s193, 1
          %s702 = smul.addr %s701, 8
          %s703 = scalar_lea.vmem [#allocation11], %s702
          %705 = dma.done %s700, 128
        $region80: #{tpu_custom_call.1} parent=71 // pred_fallthru
          _
        // Predicated region
        $region81: #{tpu_custom_call.1} parent=71 // pred_check
          %p706 = pneg %p236
        $region82: #{tpu_custom_call.1} parent=71 // pred_check_branch
          %708 = sbr.rel (%p706) target = $region84
        $region83: #{tpu_custom_call.1} parent=71 // pred_region
          %s709 = sand.u32 %s31, 1
          %s710 = scalar_lea.sflag [#allocation12], %s709
          %s711 = sand.u32 %s221, 1
          %s712 = smul.addr %s711, 8
          %s713 = scalar_lea.vmem [#allocation13], %s712
          %715 = dma.done %s710, 128
        $region84: #{tpu_custom_call.1} parent=71 // pred_fallthru
          _
      $region72: #{tpu_custom_call.1} parent=5 // pred_fallthru
        _
    $region6: #{tpu_custom_call.1} parent=1 // loop_footer
      %s29 = sadd.s32 1, %s25
    $region7: #{tpu_custom_call.1} parent=1 // loop_footer_branch
      %24 = sbr.rel target = $region3
    $region8: #{tpu_custom_call.1} parent=1 // loop_exit
      _
    %716 = vsyncpa [#allocation3], 1
    %s717 = scalar_lea.sflag [#allocation3], 1
    %718 = vsyncpa %s717, 1
    %719 = vsyncpa [#allocation6], 1
    %720 = vsyncpa [#allocation9], 1
    %721 = vsyncpa [#allocation4], 1
    %s722 = scalar_lea.sflag [#allocation4], 1
    %723 = vsyncpa %s722, 1
    %724 = vsyncpa [#allocation12], 1
    %s725 = scalar_lea.sflag [#allocation12], 1
    %726 = vsyncpa %s725, 1

</llo_original>
